<compile_context>
chip_gen: v5e
topology: v5e:2x2
jax: 0.10.0
libtpu: 0.0.40
codegen_flags: <defaults>
</compile_context>

<pallas_src>
import functools

import jax
import jax.numpy as jnp
from jax.experimental import pallas as pl
from jax.experimental.pallas import tpu as pltpu


# ------------------------------ Pallas kernel ------------------------------ #
def _quanv3x3_kernel(x_ref, w_ref, b_ref, o_ref, *, taps, cols):
    """One batch image per grid step.

    x_ref : (1, C_in, Lp)   zero-padded image, H_pad*W_pad flattened onto lanes
    w_ref : (9, O, C_in)    real part of the 3x3 taps, tap-major (VMEM resident)
    b_ref : (O, 1)          real part of the bias (VMEM resident)
    o_ref : (1, O, cols)    output: channels on sublanes, spatial positions on lanes
                            (cols is a multiple of 128 -> unmasked vector stores)
    """
    xv = x_ref[0]                                             # (C_in, Lp)

    # Tap 0 initializes the accumulator; taps 1..8 accumulate.  Each tap is a
    # contiguous lane slice at a static offset, so there is no in-kernel reshape
    # and no HBM im2col -- the patch expansion lives entirely in VMEM/vregs.
    d0 = taps[0]
    acc = jnp.dot(w_ref[0], xv[:, d0:d0 + cols],
                  preferred_element_type=jnp.float32)         # (O, cols)
    for t in range(1, 9):                                     # fully unrolled
        d = taps[t]
        acc = acc + jnp.dot(w_ref[t], xv[:, d:d + cols],
                            preferred_element_type=jnp.float32)

    o_ref[0] = acc + b_ref[...]                               # (O,1) broadcast on lanes


# ------------------------------ wrappers (JAX) ------------------------------ #
def prepare_params(weight_c, bias_c):
    """Hoisted out of the jitted forward: real parts + tap-major relayout."""
    w_taps = jnp.real(weight_c)[..., :9].astype(jnp.float32)      # (O, C_in, 9)
    w_k = jnp.transpose(w_taps, (2, 0, 1))                        # (9, O, C_in)
    b_r = jnp.real(bias_c).astype(jnp.float32).reshape(-1, 1)     # (O, 1)
    return w_k, b_r


def flipped_quanv3x3_forward(x, w_k, b_r, *, stride, padding):
    """x: (B, C_in, H, W) f32 -> (B, O, h_out, w_out) f32."""
    pad_l, pad_r, pad_t, pad_b = padding if padding is not None else (0, 0, 0, 0)
    B, C_in, H, W = x.shape
    n_taps, O, _ = w_k.shape
    assert n_taps == 9

    H_pad, W_pad = H + pad_t + pad_b, W + pad_l + pad_r
    H_conv, W_conv = H_pad - 2, W_pad - 2            # stride-1 conv positions
    h_out = (H - 3 + pad_t + pad_b) // stride + 1
    w_out = (W - 3 + pad_l + pad_r) // stride + 1

    # Cheap one-time layout plumbing in XLA: asymmetric zero pad, then flatten the
    # spatial dims onto the lane axis so every 3x3 tap becomes a contiguous lane
    # slice inside the kernel.  Columns >= W_conv of each output row are wrap-around
    # garbage and are sliced off afterwards.
    x_pad = jnp.pad(x.astype(jnp.float32),
                    ((0, 0), (0, 0), (pad_t, pad_b), (pad_l, pad_r)))
    L = H_pad * W_pad
    p_cols = H_conv * W_pad                          # valid lane width of the GEMM
    cols = ((p_cols + 127) // 128) * 128             # round up -> unmasked stores
    taps = tuple(kh * W_pad + kw for kh in range(3) for kw in range(3))
    Lp = ((taps[-1] + cols + 127) // 128) * 128      # room for the largest tap slice
    xf = jnp.pad(x_pad.reshape(B, C_in, L), ((0, 0), (0, 0), (0, Lp - L)))

    out = pl.pallas_call(
        functools.partial(_quanv3x3_kernel, taps=taps, cols=cols),
        out_shape=jax.ShapeDtypeStruct((B, O, cols), jnp.float32),
        grid_spec=pltpu.PrefetchScalarGridSpec(
            num_scalar_prefetch=0,
            grid=(B,),
            in_specs=[
                pl.BlockSpec((1, C_in, Lp), lambda b: (b, 0, 0)),   # one image / step
                pl.BlockSpec((9, O, C_in), lambda b: (0, 0, 0)),    # resident weights
                pl.BlockSpec((O, 1), lambda b: (0, 0)),             # resident bias
            ],
            out_specs=pl.BlockSpec((1, O, cols), lambda b: (b, 0, 0)),
        ),
        compiler_params=pltpu.CompilerParams(
            dimension_semantics=("parallel",),       # batch across TensorCores
        ),
    )(xf, w_k, b_r)

    # (B, O, H_conv, W_pad): drop padded / wrap-around columns, then apply the stride.
    out = out[:, :, :p_cols].reshape(B, O, H_conv, W_pad)[:, :, :, :W_conv]
    if stride > 1:
        out = out[:, :, ::stride, ::stride]
    return out[:, :, :h_out, :w_out]


# ------------------------------ reference (JAX) ----------------------------- #
def _reference_forward(x, weight_c, bias_c, stride, padding):
    pad_l, pad_r, pad_t, pad_b = padding if padding is not None else (0, 0, 0, 0)
    O, C_in, _ = weight_c.shape
    w = jnp.real(weight_c)[..., :9].reshape(O, C_in, 3, 3).astype(jnp.float32)
    b = jnp.real(bias_c).astype(jnp.float32).reshape(O)
    xp = jnp.pad(x.astype(jnp.float32),
                 ((0, 0), (0, 0), (pad_t, pad_b), (pad_l, pad_r)))
    y = jax.lax.conv_general_dilated(
        xp, w, (stride, stride), "VALID",
        dimension_numbers=("NCHW", "OIHW", "NCHW"),
        precision=jax.lax.Precision.HIGHEST)
    return y + b[None, :, None, None]


if __name__ == "__main__":
    key = jax.random.PRNGKey(0)
    k_x, k_wr, k_wi, k_br, k_bi = jax.random.split(key, 5)

    B, C_in, H, W = 2, 4, 16, 16
    out_channels = 8

    x = jax.random.normal(k_x, (B, C_in, H, W), jnp.float32)
    weight = (jax.random.normal(k_wr, (out_channels, C_in, 4 ** 2 - 1), jnp.float32)
              + 1j * jax.random.normal(k_wi, (out_channels, C_in, 4 ** 2 - 1),
                                       jnp.float32)).astype(jnp.complex64)
    bias = (jax.random.normal(k_br, (out_channels, 1), jnp.float32)
            + 1j * jax.random.normal(k_bi, (out_channels, 1),
                                     jnp.float32)).astype(jnp.complex64)

    w_k, b_r = prepare_params(weight, bias)   # hoisted out of the jitted forward

    for stride, padding in ((1, (1, 1, 1, 1)), (2, (0, 0, 0, 0))):
        fwd = jax.jit(functools.partial(flipped_quanv3x3_forward,
                                        stride=stride, padding=padding))
        out = fwd(x, w_k, b_r)
        jax.block_until_ready(out)

        h_out = (H - 3 + padding[2] + padding[3]) // stride + 1
        w_out = (W - 3 + padding[0] + padding[1]) // stride + 1
        assert out.shape == (B, out_channels, h_out, w_out)
        assert out.dtype == jnp.float32

        ref = _reference_forward(x, weight, bias, stride, padding)
        assert bool(jnp.allclose(out, ref, atol=2e-2, rtol=2e-2)), (
            "max abs err", float(jnp.max(jnp.abs(out - ref))))

    print("KERNEL_OK")
</pallas_src>

<mosaic_0001>
module attributes {stable_mosaic.version = 11 : i64} {
  func.func @_quanv3x3_kernel(%arg0: i32, %arg1: memref<1x4x512xf32, #tpu.memory_space<vmem>>, %arg2: memref<9x8x4xf32, #tpu.memory_space<vmem>>, %arg3: memref<8x1xf32, #tpu.memory_space<vmem>>, %arg4: memref<1x8x384xf32, #tpu.memory_space<vmem>>) attributes {dimension_semantics = [#tpu.dimension_semantics<parallel>], iteration_bounds = array<i64: 2>, scalar_prefetch = 0 : i64, scratch_operands = 0 : i64, tpu.core_type = #tpu.core_type<tc>, window_params = [{transform_indices = @transform_0, window_bounds = array<i64: 1, 4, 512>}, {pipeline_mode = #tpu.pipeline_mode<synchronous>, transform_indices = @transform_1, window_bounds = array<i64: 9, 8, 4>}, {pipeline_mode = #tpu.pipeline_mode<synchronous>, transform_indices = @transform_2, window_bounds = array<i64: 8, 1>}, {transform_indices = @transform_3, window_bounds = array<i64: 1, 8, 384>}]} {
    %c0 = arith.constant 0 : index
    %c0_0 = arith.constant 0 : index
    %c0_1 = arith.constant 0 : index
    %0 = vector.load %arg1[%c0, %c0_0, %c0_1] : memref<1x4x512xf32, #tpu.memory_space<vmem>>, vector<1x4x512xf32>
    %1 = vector.shape_cast %0 : vector<1x4x512xf32> to vector<4x512xf32>
    %c0_2 = arith.constant 0 : index
    %c0_3 = arith.constant 0 : index
    %c0_4 = arith.constant 0 : index
    %2 = vector.load %arg2[%c0_2, %c0_3, %c0_4] : memref<9x8x4xf32, #tpu.memory_space<vmem>>, vector<1x8x4xf32>
    %3 = vector.shape_cast %2 : vector<1x8x4xf32> to vector<8x4xf32>
    %4 = vector.extract_strided_slice %1 {offsets = [0, 0], sizes = [4, 384], strides = [1, 1]} : vector<4x512xf32> to vector<4x384xf32>
    %cst = arith.constant dense<0.000000e+00> : vector<8x384xf32>
    %5 = tpu.matmul %3, %4, %cst {dimension_numbers = #tpu.dot_dimension_numbers<[1], [0], [0], [1], [0, 0, 1, 1], [], []>} : vector<8x4xf32>, vector<4x384xf32>, vector<8x384xf32> -> vector<8x384xf32>
    %c1 = arith.constant 1 : index
    %c0_5 = arith.constant 0 : index
    %c0_6 = arith.constant 0 : index
    %6 = vector.load %arg2[%c1, %c0_5, %c0_6] : memref<9x8x4xf32, #tpu.memory_space<vmem>>, vector<1x8x4xf32>
    %7 = vector.shape_cast %6 : vector<1x8x4xf32> to vector<8x4xf32>
    %8 = vector.extract_strided_slice %1 {offsets = [0, 1], sizes = [4, 384], strides = [1, 1]} : vector<4x512xf32> to vector<4x384xf32>
    %cst_7 = arith.constant dense<0.000000e+00> : vector<8x384xf32>
    %9 = tpu.matmul %7, %8, %cst_7 {dimension_numbers = #tpu.dot_dimension_numbers<[1], [0], [0], [1], [0, 0, 1, 1], [], []>} : vector<8x4xf32>, vector<4x384xf32>, vector<8x384xf32> -> vector<8x384xf32>
    %10 = arith.addf %5, %9 : vector<8x384xf32>
    %c2 = arith.constant 2 : index
    %c0_8 = arith.constant 0 : index
    %c0_9 = arith.constant 0 : index
    %11 = vector.load %arg2[%c2, %c0_8, %c0_9] : memref<9x8x4xf32, #tpu.memory_space<vmem>>, vector<1x8x4xf32>
    %12 = vector.shape_cast %11 : vector<1x8x4xf32> to vector<8x4xf32>
    %13 = vector.extract_strided_slice %1 {offsets = [0, 2], sizes = [4, 384], strides = [1, 1]} : vector<4x512xf32> to vector<4x384xf32>
    %cst_10 = arith.constant dense<0.000000e+00> : vector<8x384xf32>
    %14 = tpu.matmul %12, %13, %cst_10 {dimension_numbers = #tpu.dot_dimension_numbers<[1], [0], [0], [1], [0, 0, 1, 1], [], []>} : vector<8x4xf32>, vector<4x384xf32>, vector<8x384xf32> -> vector<8x384xf32>
    %15 = arith.addf %10, %14 : vector<8x384xf32>
    %c3 = arith.constant 3 : index
    %c0_11 = arith.constant 0 : index
    %c0_12 = arith.constant 0 : index
    %16 = vector.load %arg2[%c3, %c0_11, %c0_12] : memref<9x8x4xf32, #tpu.memory_space<vmem>>, vector<1x8x4xf32>
    %17 = vector.shape_cast %16 : vector<1x8x4xf32> to vector<8x4xf32>
    %18 = vector.extract_strided_slice %1 {offsets = [0, 18], sizes = [4, 384], strides = [1, 1]} : vector<4x512xf32> to vector<4x384xf32>
    %cst_13 = arith.constant dense<0.000000e+00> : vector<8x384xf32>
    %19 = tpu.matmul %17, %18, %cst_13 {dimension_numbers = #tpu.dot_dimension_numbers<[1], [0], [0], [1], [0, 0, 1, 1], [], []>} : vector<8x4xf32>, vector<4x384xf32>, vector<8x384xf32> -> vector<8x384xf32>
    %20 = arith.addf %15, %19 : vector<8x384xf32>
    %c4 = arith.constant 4 : index
    %c0_14 = arith.constant 0 : index
    %c0_15 = arith.constant 0 : index
    %21 = vector.load %arg2[%c4, %c0_14, %c0_15] : memref<9x8x4xf32, #tpu.memory_space<vmem>>, vector<1x8x4xf32>
    %22 = vector.shape_cast %21 : vector<1x8x4xf32> to vector<8x4xf32>
    %23 = vector.extract_strided_slice %1 {offsets = [0, 19], sizes = [4, 384], strides = [1, 1]} : vector<4x512xf32> to vector<4x384xf32>
    %cst_16 = arith.constant dense<0.000000e+00> : vector<8x384xf32>
    %24 = tpu.matmul %22, %23, %cst_16 {dimension_numbers = #tpu.dot_dimension_numbers<[1], [0], [0], [1], [0, 0, 1, 1], [], []>} : vector<8x4xf32>, vector<4x384xf32>, vector<8x384xf32> -> vector<8x384xf32>
    %25 = arith.addf %20, %24 : vector<8x384xf32>
    %c5 = arith.constant 5 : index
    %c0_17 = arith.constant 0 : index
    %c0_18 = arith.constant 0 : index
    %26 = vector.load %arg2[%c5, %c0_17, %c0_18] : memref<9x8x4xf32, #tpu.memory_space<vmem>>, vector<1x8x4xf32>
    %27 = vector.shape_cast %26 : vector<1x8x4xf32> to vector<8x4xf32>
    %28 = vector.extract_strided_slice %1 {offsets = [0, 20], sizes = [4, 384], strides = [1, 1]} : vector<4x512xf32> to vector<4x384xf32>
    %cst_19 = arith.constant dense<0.000000e+00> : vector<8x384xf32>
    %29 = tpu.matmul %27, %28, %cst_19 {dimension_numbers = #tpu.dot_dimension_numbers<[1], [0], [0], [1], [0, 0, 1, 1], [], []>} : vector<8x4xf32>, vector<4x384xf32>, vector<8x384xf32> -> vector<8x384xf32>
    %30 = arith.addf %25, %29 : vector<8x384xf32>
    %c6 = arith.constant 6 : index
    %c0_20 = arith.constant 0 : index
    %c0_21 = arith.constant 0 : index
    %31 = vector.load %arg2[%c6, %c0_20, %c0_21] : memref<9x8x4xf32, #tpu.memory_space<vmem>>, vector<1x8x4xf32>
    %32 = vector.shape_cast %31 : vector<1x8x4xf32> to vector<8x4xf32>
    %33 = vector.extract_strided_slice %1 {offsets = [0, 36], sizes = [4, 384], strides = [1, 1]} : vector<4x512xf32> to vector<4x384xf32>
    %cst_22 = arith.constant dense<0.000000e+00> : vector<8x384xf32>
    %34 = tpu.matmul %32, %33, %cst_22 {dimension_numbers = #tpu.dot_dimension_numbers<[1], [0], [0], [1], [0, 0, 1, 1], [], []>} : vector<8x4xf32>, vector<4x384xf32>, vector<8x384xf32> -> vector<8x384xf32>
    %35 = arith.addf %30, %34 : vector<8x384xf32>
    %c7 = arith.constant 7 : index
    %c0_23 = arith.constant 0 : index
    %c0_24 = arith.constant 0 : index
    %36 = vector.load %arg2[%c7, %c0_23, %c0_24] : memref<9x8x4xf32, #tpu.memory_space<vmem>>, vector<1x8x4xf32>
    %37 = vector.shape_cast %36 : vector<1x8x4xf32> to vector<8x4xf32>
    %38 = vector.extract_strided_slice %1 {offsets = [0, 37], sizes = [4, 384], strides = [1, 1]} : vector<4x512xf32> to vector<4x384xf32>
    %cst_25 = arith.constant dense<0.000000e+00> : vector<8x384xf32>
    %39 = tpu.matmul %37, %38, %cst_25 {dimension_numbers = #tpu.dot_dimension_numbers<[1], [0], [0], [1], [0, 0, 1, 1], [], []>} : vector<8x4xf32>, vector<4x384xf32>, vector<8x384xf32> -> vector<8x384xf32>
    %40 = arith.addf %35, %39 : vector<8x384xf32>
    %c8 = arith.constant 8 : index
    %c0_26 = arith.constant 0 : index
    %c0_27 = arith.constant 0 : index
    %41 = vector.load %arg2[%c8, %c0_26, %c0_27] : memref<9x8x4xf32, #tpu.memory_space<vmem>>, vector<1x8x4xf32>
    %42 = vector.shape_cast %41 : vector<1x8x4xf32> to vector<8x4xf32>
    %43 = vector.extract_strided_slice %1 {offsets = [0, 38], sizes = [4, 384], strides = [1, 1]} : vector<4x512xf32> to vector<4x384xf32>
    %cst_28 = arith.constant dense<0.000000e+00> : vector<8x384xf32>
    %44 = tpu.matmul %42, %43, %cst_28 {dimension_numbers = #tpu.dot_dimension_numbers<[1], [0], [0], [1], [0, 0, 1, 1], [], []>} : vector<8x4xf32>, vector<4x384xf32>, vector<8x384xf32> -> vector<8x384xf32>
    %45 = arith.addf %40, %44 : vector<8x384xf32>
    %c0_29 = arith.constant 0 : index
    %c0_30 = arith.constant 0 : index
    %46 = vector.load %arg3[%c0_29, %c0_30] : memref<8x1xf32, #tpu.memory_space<vmem>>, vector<8x1xf32>
    %47 = vector.broadcast %46 : vector<8x1xf32> to vector<8x384xf32>
    %48 = arith.addf %45, %47 : vector<8x384xf32>
    %c0_31 = arith.constant 0 : index
    %c0_32 = arith.constant 0 : index
    %c0_33 = arith.constant 0 : index
    %49 = vector.load %arg4[%c0_31, %c0_32, %c0_33] : memref<1x8x384xf32, #tpu.memory_space<vmem>>, vector<1x8x384xf32>
    %50 = vector.shape_cast %49 : vector<1x8x384xf32> to vector<8x384xf32>
    %51 = vector.shape_cast %48 : vector<8x384xf32> to vector<1x8x384xf32>
    tpu.vector_store %arg4[%c0_31, %c0_32, %c0_33], %51 {strides = array<i32>} : memref<1x8x384xf32, #tpu.memory_space<vmem>>, vector<1x8x384xf32>,
    return
  }
  func.func @transform_0(%arg0: i32) -> (i32, i32, i32) {
    %c0_i32 = arith.constant 0 : i32
    %c0_i32_0 = arith.constant 0 : i32
    %c0_i32_1 = arith.constant 0 : i32
    return %arg0, %c0_i32, %c0_i32_0 : i32, i32, i32
  }
  func.func @transform_1(%arg0: i32) -> (i32, i32, i32) {
    %c0_i32 = arith.constant 0 : i32
    %c0_i32_0 = arith.constant 0 : i32
    %c0_i32_1 = arith.constant 0 : i32
    %c0_i32_2 = arith.constant 0 : i32
    return %c0_i32, %c0_i32_0, %c0_i32_1 : i32, i32, i32
  }
  func.func @transform_2(%arg0: i32) -> (i32, i32) {
    %c0_i32 = arith.constant 0 : i32
    %c0_i32_0 = arith.constant 0 : i32
    %c0_i32_1 = arith.constant 0 : i32
    return %c0_i32, %c0_i32_0 : i32, i32
  }
  func.func @transform_3(%arg0: i32) -> (i32, i32, i32) {
    %c0_i32 = arith.constant 0 : i32
    %c0_i32_0 = arith.constant 0 : i32
    %c0_i32_1 = arith.constant 0 : i32
    return %arg0, %c0_i32, %c0_i32_0 : i32, i32, i32
  }
}

</mosaic_0001>

<llo_original>
// kernel: flipped_quanv3x3_forward.1
$region0: #{flipped_quanv3x3_forward.1}
  #allocation0 [shape = 'u32[]', space=smem, size = 0x4, offset = 0x4, fixed_abs, tag = 'smem constant byte address 0x4 - core index']
  #allocation1 [shape = 'u32[72,128]{1,0:T(1,128)}', space=vmem, size = 0x9000, scoped, tag = 'internal scratch']
  %s0 = inlined_call_operand.vmem [shape: f32[2,4,512], index: 0, kind: input, shape index: {}]
  %s1 = inlined_call_operand.vmem [shape: f32[9,8,4], index: 1, kind: input, shape index: {}]
  %s2 = inlined_call_operand.vmem [shape: f32[8,1], index: 2, kind: input, shape index: {}]
  %s3 = inlined_call_operand.vmem [shape: f32[2,8,384], index: 3, kind: output, shape index: {}]
  %s4 = sld [smem:[#allocation0]]
  $region45: #{flipped_quanv3x3_forward.1} parent=0
    _
  %s6 = ssub.s32 1, %s4
  %s7 = scalar_select 0, %s6, %s4
  loop: start=0, step=1, limit=4
  $region2: #{flipped_quanv3x3_forward.1} parent=0 // loop_pre_header
    _
  $region3: #{flipped_quanv3x3_forward.1} parent=0 // loop_header
    %s9 = sphi 0, %s13
    %p10 = scmp.ge.s32.totalorder %s9, 4
    %s19 = sphi 0, %s21
    %s22 = sphi 0, %s19
    %s23 = sphi 0, %s22
    %s39 = sphi 0, %s23
    %s43 = sphi 0, %s43
    %s45 = sphi 0, %s43
    %s46 = sphi 0, %s45
    %s60 = sphi 0, %s46
    %s64 = sphi 0, %s64
    %s66 = sphi 0, %s64
    %s67 = sphi 0, %s66
    %s81 = sphi 0, %s67
    %s87 = sphi 0, %s89
    %s90 = sphi 0, %s87
    %s91 = sphi 0, %s90
    %s107 = sphi 0, %s91
  $region4: #{flipped_quanv3x3_forward.1} parent=0 // loop_header_branch
    %12 = sbr.rel (%p10) target = $region8
  $region5: #{flipped_quanv3x3_forward.1} parent=0 // loop_body
    %s14 = ssub.s32 %s9, 1
    %s15 = ssub.s32 %s9, 2
    %s16 = sadd.s32 %s9, 1
    %s17 = ssub.s32 %s9, %s16
    %p18 = scmp.eq.s32.totalorder %s17, 0
    %s20 = sadd.s32 %s19, 1
    %s21 = scalar_select %p18, %s19, %s20
    %p24 = pneg %p18
    %p25 = scmp.eq.s32.totalorder %s9, 1
    %p26 = por %p24, %p25
    %p27 = scmp.ne.s32.totalorder %s19, %s22
    %p28 = scmp.eq.s32.totalorder %s9, 0
    %p29 = por %p27, %p28
    %p30 = scmp.ne.s32.totalorder %s19, %s22
    %p31 = scmp.eq.s32.totalorder %s14, 1
    %p32 = por %p30, %p31
    %p33 = scmp.ne.s32.totalorder %s22, %s23
    %p34 = scmp.eq.s32.totalorder %s14, 0
    %p35 = por %p33, %p34
    %p36 = scmp.ne.s32.totalorder %s22, %s23
    %p37 = scmp.eq.s32.totalorder %s15, 1
    %p38 = por %p36, %p37
    %p40 = scmp.ne.s32.totalorder %s23, %s39
    %p41 = scmp.eq.s32.totalorder %s15, 0
    %p42 = por %p40, %p41
    %s44 = sadd.s32 %s43, 1
    %p47 = scmp.eq.s32.totalorder %s9, 1
    %p48 = scmp.ne.s32.totalorder %s43, %s45
    %p49 = scmp.eq.s32.totalorder %s9, 0
    %p50 = por %p48, %p49
    %p51 = scmp.ne.s32.totalorder %s43, %s45
    %p52 = scmp.eq.s32.totalorder %s14, 1
    %p53 = por %p51, %p52
    %p54 = scmp.ne.s32.totalorder %s45, %s46
    %p55 = scmp.eq.s32.totalorder %s14, 0
    %p56 = por %p54, %p55
    %p57 = scmp.ne.s32.totalorder %s45, %s46
    %p58 = scmp.eq.s32.totalorder %s15, 1
    %p59 = por %p57, %p58
    %p61 = scmp.ne.s32.totalorder %s46, %s60
    %p62 = scmp.eq.s32.totalorder %s15, 0
    %p63 = por %p61, %p62
    %s65 = sadd.s32 %s64, 1
    %p68 = scmp.eq.s32.totalorder %s9, 1
    %p69 = scmp.ne.s32.totalorder %s64, %s66
    %p70 = scmp.eq.s32.totalorder %s9, 0
    %p71 = por %p69, %p70
    %p72 = scmp.ne.s32.totalorder %s64, %s66
    %p73 = scmp.eq.s32.totalorder %s14, 1
    %p74 = por %p72, %p73
    %p75 = scmp.ne.s32.totalorder %s66, %s67
    %p76 = scmp.eq.s32.totalorder %s14, 0
    %p77 = por %p75, %p76
    %p78 = scmp.ne.s32.totalorder %s66, %s67
    %p79 = scmp.eq.s32.totalorder %s15, 1
    %p80 = por %p78, %p79
    %p82 = scmp.ne.s32.totalorder %s67, %s81
    %p83 = scmp.eq.s32.totalorder %s15, 0
    %p84 = por %p82, %p83
    %s85 = ssub.s32 %s9, %s16
    %p86 = scmp.eq.s32.totalorder %s85, 0
    %s88 = sadd.s32 %s87, 1
    %s89 = scalar_select %p86, %s87, %s88
    %p92 = pneg %p86
    %p93 = scmp.eq.s32.totalorder %s9, 1
    %p94 = por %p92, %p93
    %p95 = scmp.ne.s32.totalorder %s87, %s90
    %p96 = scmp.eq.s32.totalorder %s9, 0
    %p97 = por %p95, %p96
    %p98 = scmp.ne.s32.totalorder %s87, %s90
    %p99 = scmp.eq.s32.totalorder %s14, 1
    %p100 = por %p98, %p99
    %p101 = scmp.ne.s32.totalorder %s90, %s91
    %p102 = scmp.eq.s32.totalorder %s14, 0
    %p103 = por %p101, %p102
    %p104 = scmp.ne.s32.totalorder %s90, %s91
    %p105 = scmp.eq.s32.totalorder %s15, 1
    %p106 = por %p104, %p105
    %p108 = scmp.ne.s32.totalorder %s91, %s107
    %p109 = scmp.eq.s32.totalorder %s15, 0
    %p110 = por %p108, %p109
    %p111 = scmp.le.s32.totalorder 1, %s9
    %p112 = scmp.lt.s32.totalorder %s9, 3
    %p113 = pnand %p111, %p112
    %p114 = pneg %p113
    // Predicated region
    $region9: #{flipped_quanv3x3_forward.1} parent=5 // pred_check
      _
    $region10: #{flipped_quanv3x3_forward.1} parent=5 // pred_check_branch
      %116 = sbr.rel (%p113) target = $region12
    $region11: #{flipped_quanv3x3_forward.1} parent=5 // pred_region
      %s117 = ssub.s32 %s9, 1
      // Predicated region
      $region13: #{flipped_quanv3x3_forward.1} parent=11 // pred_check
        %p118 = pneg %p56
      $region14: #{flipped_quanv3x3_forward.1} parent=11 // pred_check_branch
        %120 = sbr.rel (%p118) target = $region16
      $region15: #{flipped_quanv3x3_forward.1} parent=11 // pred_region
        _
      $region16: #{flipped_quanv3x3_forward.1} parent=11 // pred_fallthru
        _
      // Predicated region
      $region17: #{flipped_quanv3x3_forward.1} parent=11 // pred_check
        %p121 = pneg %p77
      $region18: #{flipped_quanv3x3_forward.1} parent=11 // pred_check_branch
        %123 = sbr.rel (%p121) target = $region20
      $region19: #{flipped_quanv3x3_forward.1} parent=11 // pred_region
        _
      $region20: #{flipped_quanv3x3_forward.1} parent=11 // pred_fallthru
        _
    $region12: #{flipped_quanv3x3_forward.1} parent=5 // pred_fallthru
      _
    %p124 = scmp.lt.s32.totalorder %s9, 2
    // Predicated region
    $region21: #{flipped_quanv3x3_forward.1} parent=5 // pred_check
      %p125 = pneg %p124
    $region22: #{flipped_quanv3x3_forward.1} parent=5 // pred_check_branch
      %127 = sbr.rel (%p125) target = $region24
    $region23: #{flipped_quanv3x3_forward.1} parent=5 // pred_region
      // Predicated region
      $region25: #{flipped_quanv3x3_forward.1} parent=23 // pred_check
        %p128 = pneg %p29
      $region26: #{flipped_quanv3x3_forward.1} parent=23 // pred_check_branch
        %130 = sbr.rel (%p128) target = $region28
      $region27: #{flipped_quanv3x3_forward.1} parent=23 // pred_region
        %p131 = scmp.lt.s32.totalorder %s9, 1
        %s132 = scalar_select %p131, %s9, 1
        %s133 = smul.addr %s132, 4
        %s134 = smul.addr %s133, 4
        %s135 = scalar_lea.vmem %s0, %s134
      $region28: #{flipped_quanv3x3_forward.1} parent=23 // pred_fallthru
        _
    $region24: #{flipped_quanv3x3_forward.1} parent=5 // pred_fallthru
      _
    %p136 = scmp.le.s32.totalorder 1, %s9
    %p137 = scmp.lt.s32.totalorder %s9, 3
    %p138 = pnand %p136, %p137
    %p139 = pneg %p138
    // Predicated region
    $region29: #{flipped_quanv3x3_forward.1} parent=5 // pred_check
      _
    $region30: #{flipped_quanv3x3_forward.1} parent=5 // pred_check_branch
      %141 = sbr.rel (%p138) target = $region32
    $region31: #{flipped_quanv3x3_forward.1} parent=5 // pred_region
      %s142 = ssub.s32 %s9, 1
      %p143 = scmp.lt.s32.totalorder %s14, 1
      %s144 = scalar_select %p143, %s14, 1
      %s145 = smul.addr %s144, 4
      %s146 = smul.addr %s145, 4
      %s147 = scalar_lea.vmem %s0, %s146
      %p148 = pneg %p35
      %p149 = pneg %p32
      %p150 = pneg %p56
      %p151 = pneg %p53
      %p152 = pneg %p77
      %p153 = pneg %p74
      %p154 = pneg %p103
      %p155 = pneg %p100
      %p156 = scmp.lt.s32.totalorder %s14, 1
      %s157 = scalar_select %p156, %s14, 1
      %s158 = smul.addr %s157, 3
      %s159 = smul.addr %s158, 8
      %s160 = scalar_lea.vmem %s3, %s159
      %p161 = scmp.lt.s32.totalorder %s14, 1
      %s162 = scalar_select %p161, %s14, 1
      %s163 = smul.addr %s162, 4
      %s164 = smul.addr %s163, 4
      %s165 = scalar_lea.vmem %s0, %s164
      %p166 = scmp.lt.s32.totalorder %s14, 1
      %s167 = scalar_select %p166, %s14, 1
      %s168 = smul.addr %s167, 3
      %s169 = smul.addr %s168, 8
      %s170 = scalar_lea.vmem %s3, %s169
      %v171 = vld [vmem:[%s165] sm:$0xff]
      %v172 = vld [vmem:[%s165 + $0x8] sm:$0xff]
      %v173 = vld [vmem:[%s1] sm:$0xff]
      %s174 = scalar_lea.vmem %s1, 8
      %v175 = vld [vmem:[%s174] sm:$0xff]
      %178 = vst [vmem:[#allocation1] ss:$2 sm:$0xff] %v171
      %s179 = scalar_lea.vmem [#allocation1], 16
      %180 = vst [vmem:[%s179] ss:$2 sm:$0xff] %v172
      %v181 = vld.sshfl [vmem:[#allocation1] sm:$0xff pattern:$0x75316420]
      %v182 = vld.sshfl [vmem:[#allocation1 + $0x8] sm:$0xff pattern:$0x75316420]
      %v183 = vld.sshfl [vmem:[#allocation1 + $0x10] sm:$0xff pattern:$0x75316420]
      %v184 = vld.sshfl [vmem:[#allocation1 + $0x18] sm:$0xff pattern:$0x75316420]
      %185 = vrot.lane.b32.xlu0 %v181, 127
      %v186 = vpop.permute.xlu0 %185
      %187 = vrot.lane.b32.xlu0 %v182, 127
      %v188 = vpop.permute.xlu0 %187
      %189 = vrot.lane.b32.xlu0 %v183, 127
      %v190 = vpop.permute.xlu0 %189
      %191 = vrot.lane.b32.xlu0 %v184, 127
      %v192 = vpop.permute.xlu0 %191
      %vm193 = vcmask 1039360
      %v194 = vsel %vm193, %v186, %v188
      %v195 = vsel %vm193, %v188, %v190
      %v196 = vsel %vm193, %v190, %v192
      %vm197 = vcmask 31744
      %v199 = vsel %vm197, %v175, 0
      %vm201 = vcmask 1043456
      %v202 = vsel %vm201, %v194, 0
      %v204 = vsel %vm201, %v195, 0
      %v206 = vsel %vm201, %v196, 0
      %208 = vmatpush.msra.mxu0 0.0
      %209 = vmatpush.msra.mxu0 0.0
      %210 = vmatpush.msra.mxu0 0.0
      %211 = vmatpush.msra.mxu0 0.0
      %212 = vmatpush.msra.mxu0 0.0
      %213 = vmatpush.msra.mxu0 0.0
      %214 = vmatpush.msra.mxu0 0.0
      %215 = vmatpush.msra.mxu0 0.0
      %216 = vmatpush.msra.mxu0 0.0
      %217 = vmatpush.msra.mxu0 0.0
      %218 = vmatpush.msra.mxu0 0.0
      %219 = vmatpush.msra.mxu0 0.0
      %220 = vmatpush.msra.mxu0 0.0
      %221 = vmatpush.msra.mxu0 0.0
      %222 = vmatpush.msra.mxu0 0.0
      %223 = vmatpush.msra.mxu0 %v202
      %224 = vmatmul.f32.gmra.mxu0 %v199
      %v225 = vpop.f32.mrf.mxu0
      %v226 = vadd.f32 0.0, %v225
      %227 = vdwg.mxu0
      %228 = vmatpush.msra.mxu0 0.0
      %229 = vmatpush.msra.mxu0 0.0
      %230 = vmatpush.msra.mxu0 0.0
      %231 = vmatpush.msra.mxu0 0.0
      %232 = vmatpush.msra.mxu0 0.0
      %233 = vmatpush.msra.mxu0 0.0
      %234 = vmatpush.msra.mxu0 0.0
      %235 = vmatpush.msra.mxu0 0.0
      %236 = vmatpush.msra.mxu0 0.0
      %237 = vmatpush.msra.mxu0 0.0
      %238 = vmatpush.msra.mxu0 0.0
      %239 = vmatpush.msra.mxu0 0.0
      %240 = vmatpush.msra.mxu0 0.0
      %241 = vmatpush.msra.mxu0 0.0
      %242 = vmatpush.msra.mxu0 0.0
      %243 = vmatpush.msra.mxu0 %v204
      %244 = vmatmul.f32.gmra.mxu0 %v199
      %v245 = vpop.f32.mrf.mxu0
      %v246 = vadd.f32 0.0, %v245
      %247 = vdwg.mxu0
      %248 = vmatpush.msra.mxu0 0.0
      %249 = vmatpush.msra.mxu0 0.0
      %250 = vmatpush.msra.mxu0 0.0
      %251 = vmatpush.msra.mxu0 0.0
      %252 = vmatpush.msra.mxu0 0.0
      %253 = vmatpush.msra.mxu0 0.0
      %254 = vmatpush.msra.mxu0 0.0
      %255 = vmatpush.msra.mxu0 0.0
      %256 = vmatpush.msra.mxu0 0.0
      %257 = vmatpush.msra.mxu0 0.0
      %258 = vmatpush.msra.mxu0 0.0
      %259 = vmatpush.msra.mxu0 0.0
      %260 = vmatpush.msra.mxu0 0.0
      %261 = vmatpush.msra.mxu0 0.0
      %262 = vmatpush.msra.mxu0 0.0
      %263 = vmatpush.msra.mxu0 %v206
      %264 = vmatmul.f32.gmra.mxu0 %v199
      %v265 = vpop.f32.mrf.mxu0
      %v266 = vadd.f32 0.0, %v265
      %267 = vdwg.mxu0
      %268 = vst [vmem:[#allocation1] ss:$2 sm:$0xff] %v171
      %s269 = scalar_lea.vmem [#allocation1], 16
      %270 = vst [vmem:[%s269] ss:$2 sm:$0xff] %v172
      %v271 = vld.sshfl [vmem:[#allocation1] sm:$0xff pattern:$0x75316420]
      %v272 = vld.sshfl [vmem:[#allocation1 + $0x8] sm:$0xff pattern:$0x75316420]
      %v273 = vld.sshfl [vmem:[#allocation1 + $0x10] sm:$0xff pattern:$0x75316420]
      %v275 = vsel %vm197, %v173, 0
      %v277 = vsel %vm201, %v271, 0
      %v279 = vsel %vm201, %v272, 0
      %v281 = vsel %vm201, %v273, 0
      %283 = vmatpush.msra.mxu0 0.0
      %284 = vmatpush.msra.mxu0 0.0
      %285 = vmatpush.msra.mxu0 0.0
      %286 = vmatpush.msra.mxu0 0.0
      %287 = vmatpush.msra.mxu0 0.0
      %288 = vmatpush.msra.mxu0 0.0
      %289 = vmatpush.msra.mxu0 0.0
      %290 = vmatpush.msra.mxu0 0.0
      %291 = vmatpush.msra.mxu0 0.0
      %292 = vmatpush.msra.mxu0 0.0
      %293 = vmatpush.msra.mxu0 0.0
      %294 = vmatpush.msra.mxu0 0.0
      %295 = vmatpush.msra.mxu0 0.0
      %296 = vmatpush.msra.mxu0 0.0
      %297 = vmatpush.msra.mxu0 0.0
      %298 = vmatpush.msra.mxu0 %v277
      %299 = vmatmul.f32.gmra.mxu0 %v275
      %v300 = vpop.f32.mrf.mxu0
      %v301 = vadd.f32 %v226, %v300
      %302 = vdwg.mxu0
      %303 = vmatpush.msra.mxu0 0.0
      %304 = vmatpush.msra.mxu0 0.0
      %305 = vmatpush.msra.mxu0 0.0
      %306 = vmatpush.msra.mxu0 0.0
      %307 = vmatpush.msra.mxu0 0.0
      %308 = vmatpush.msra.mxu0 0.0
      %309 = vmatpush.msra.mxu0 0.0
      %310 = vmatpush.msra.mxu0 0.0
      %311 = vmatpush.msra.mxu0 0.0
      %312 = vmatpush.msra.mxu0 0.0
      %313 = vmatpush.msra.mxu0 0.0
      %314 = vmatpush.msra.mxu0 0.0
      %315 = vmatpush.msra.mxu0 0.0
      %316 = vmatpush.msra.mxu0 0.0
      %317 = vmatpush.msra.mxu0 0.0
      %318 = vmatpush.msra.mxu0 %v279
      %319 = vmatmul.f32.gmra.mxu0 %v275
      %v320 = vpop.f32.mrf.mxu0
      %v321 = vadd.f32 %v246, %v320
      %322 = vdwg.mxu0
      %323 = vmatpush.msra.mxu0 0.0
      %324 = vmatpush.msra.mxu0 0.0
      %325 = vmatpush.msra.mxu0 0.0
      %326 = vmatpush.msra.mxu0 0.0
      %327 = vmatpush.msra.mxu0 0.0
      %328 = vmatpush.msra.mxu0 0.0
      %329 = vmatpush.msra.mxu0 0.0
      %330 = vmatpush.msra.mxu0 0.0
      %331 = vmatpush.msra.mxu0 0.0
      %332 = vmatpush.msra.mxu0 0.0
      %333 = vmatpush.msra.mxu0 0.0
      %334 = vmatpush.msra.mxu0 0.0
      %335 = vmatpush.msra.mxu0 0.0
      %336 = vmatpush.msra.mxu0 0.0
      %337 = vmatpush.msra.mxu0 0.0
      %338 = vmatpush.msra.mxu0 %v281
      %339 = vmatmul.f32.gmra.mxu0 %v275
      %v340 = vpop.f32.mrf.mxu0
      %v341 = vadd.f32 %v266, %v340
      %342 = vdwg.mxu0
      %s343 = scalar_lea.vmem %s1, 16
      %v344 = vld [vmem:[%s343] sm:$0xff]
      %345 = vst [vmem:[#allocation1] ss:$2 sm:$0xff] %v171
      %s346 = scalar_lea.vmem [#allocation1], 16
      %347 = vst [vmem:[%s346] ss:$2 sm:$0xff] %v172
      %v348 = vld.sshfl [vmem:[#allocation1] sm:$0xff pattern:$0x75316420]
      %v349 = vld.sshfl [vmem:[#allocation1 + $0x8] sm:$0xff pattern:$0x75316420]
      %v350 = vld.sshfl [vmem:[#allocation1 + $0x10] sm:$0xff pattern:$0x75316420]
      %v351 = vld.sshfl [vmem:[#allocation1 + $0x18] sm:$0xff pattern:$0x75316420]
      %352 = vrot.lane.b32.xlu0 %v348, 126
      %v353 = vpop.permute.xlu0 %352
      %354 = vrot.lane.b32.xlu0 %v349, 126
      %v355 = vpop.permute.xlu0 %354
      %356 = vrot.lane.b32.xlu0 %v350, 126
      %v357 = vpop.permute.xlu0 %356
      %358 = vrot.lane.b32.xlu0 %v351, 126
      %v359 = vpop.permute.xlu0 %358
      %vm360 = vcmask 1031168
      %v361 = vsel %vm360, %v353, %v355
      %v362 = vsel %vm360, %v355, %v357
      %v363 = vsel %vm360, %v357, %v359
      %v365 = vsel %vm197, %v344, 0
      %v367 = vsel %vm201, %v361, 0
      %v369 = vsel %vm201, %v362, 0
      %v371 = vsel %vm201, %v363, 0
      %373 = vmatpush.msra.mxu0 0.0
      %374 = vmatpush.msra.mxu0 0.0
      %375 = vmatpush.msra.mxu0 0.0
      %376 = vmatpush.msra.mxu0 0.0
      %377 = vmatpush.msra.mxu0 0.0
      %378 = vmatpush.msra.mxu0 0.0
      %379 = vmatpush.msra.mxu0 0.0
      %380 = vmatpush.msra.mxu0 0.0
      %381 = vmatpush.msra.mxu0 0.0
      %382 = vmatpush.msra.mxu0 0.0
      %383 = vmatpush.msra.mxu0 0.0
      %384 = vmatpush.msra.mxu0 0.0
      %385 = vmatpush.msra.mxu0 0.0
      %386 = vmatpush.msra.mxu0 0.0
      %387 = vmatpush.msra.mxu0 0.0
      %388 = vmatpush.msra.mxu0 %v367
      %389 = vmatmul.f32.gmra.mxu0 %v365
      %v390 = vpop.f32.mrf.mxu0
      %v391 = vadd.f32 0.0, %v390
      %392 = vdwg.mxu0
      %393 = vmatpush.msra.mxu0 0.0
      %394 = vmatpush.msra.mxu0 0.0
      %395 = vmatpush.msra.mxu0 0.0
      %396 = vmatpush.msra.mxu0 0.0
      %397 = vmatpush.msra.mxu0 0.0
      %398 = vmatpush.msra.mxu0 0.0
      %399 = vmatpush.msra.mxu0 0.0
      %400 = vmatpush.msra.mxu0 0.0
      %401 = vmatpush.msra.mxu0 0.0
      %402 = vmatpush.msra.mxu0 0.0
      %403 = vmatpush.msra.mxu0 0.0
      %404 = vmatpush.msra.mxu0 0.0
      %405 = vmatpush.msra.mxu0 0.0
      %406 = vmatpush.msra.mxu0 0.0
      %407 = vmatpush.msra.mxu0 0.0
      %408 = vmatpush.msra.mxu0 %v369
      %409 = vmatmul.f32.gmra.mxu0 %v365
      %v410 = vpop.f32.mrf.mxu0
      %v411 = vadd.f32 0.0, %v410
      %412 = vdwg.mxu0
      %413 = vmatpush.msra.mxu0 0.0
      %414 = vmatpush.msra.mxu0 0.0
      %415 = vmatpush.msra.mxu0 0.0
      %416 = vmatpush.msra.mxu0 0.0
      %417 = vmatpush.msra.mxu0 0.0
      %418 = vmatpush.msra.mxu0 0.0
      %419 = vmatpush.msra.mxu0 0.0
      %420 = vmatpush.msra.mxu0 0.0
      %421 = vmatpush.msra.mxu0 0.0
      %422 = vmatpush.msra.mxu0 0.0
      %423 = vmatpush.msra.mxu0 0.0
      %424 = vmatpush.msra.mxu0 0.0
      %425 = vmatpush.msra.mxu0 0.0
      %426 = vmatpush.msra.mxu0 0.0
      %427 = vmatpush.msra.mxu0 0.0
      %428 = vmatpush.msra.mxu0 %v371
      %429 = vmatmul.f32.gmra.mxu0 %v365
      %v430 = vpop.f32.mrf.mxu0
      %v431 = vadd.f32 0.0, %v430
      %432 = vdwg.mxu0
      %v433 = vadd.f32 %v301, %v391
      %v434 = vadd.f32 %v321, %v411
      %v435 = vadd.f32 %v341, %v431
      %s436 = scalar_lea.vmem %s1, 24
      %v437 = vld [vmem:[%s436] sm:$0xff]
      %438 = vst [vmem:[#allocation1] ss:$2 sm:$0xff] %v171
      %s439 = scalar_lea.vmem [#allocation1], 16
      %440 = vst [vmem:[%s439] ss:$2 sm:$0xff] %v172
      %v441 = vld.sshfl [vmem:[#allocation1] sm:$0xff pattern:$0x75316420]
      %v442 = vld.sshfl [vmem:[#allocation1 + $0x8] sm:$0xff pattern:$0x75316420]
      %v443 = vld.sshfl [vmem:[#allocation1 + $0x10] sm:$0xff pattern:$0x75316420]
      %v444 = vld.sshfl [vmem:[#allocation1 + $0x18] sm:$0xff pattern:$0x75316420]
      %445 = vrot.lane.b32.xlu0 %v441, 110
      %v446 = vpop.permute.xlu0 %445
      %447 = vrot.lane.b32.xlu0 %v442, 110
      %v448 = vpop.permute.xlu0 %447
      %449 = vrot.lane.b32.xlu0 %v443, 110
      %v450 = vpop.permute.xlu0 %449
      %451 = vrot.lane.b32.xlu0 %v444, 110
      %v452 = vpop.permute.xlu0 %451
      %vm453 = vcmask 900096
      %v454 = vsel %vm453, %v446, %v448
      %v455 = vsel %vm453, %v448, %v450
      %v456 = vsel %vm453, %v450, %v452
      %v458 = vsel %vm197, %v437, 0
      %v460 = vsel %vm201, %v454, 0
      %v462 = vsel %vm201, %v455, 0
      %v464 = vsel %vm201, %v456, 0
      %466 = vmatpush.msra.mxu0 0.0
      %467 = vmatpush.msra.mxu0 0.0
      %468 = vmatpush.msra.mxu0 0.0
      %469 = vmatpush.msra.mxu0 0.0
      %470 = vmatpush.msra.mxu0 0.0
      %471 = vmatpush.msra.mxu0 0.0
      %472 = vmatpush.msra.mxu0 0.0
      %473 = vmatpush.msra.mxu0 0.0
      %474 = vmatpush.msra.mxu0 0.0
      %475 = vmatpush.msra.mxu0 0.0
      %476 = vmatpush.msra.mxu0 0.0
      %477 = vmatpush.msra.mxu0 0.0
      %478 = vmatpush.msra.mxu0 0.0
      %479 = vmatpush.msra.mxu0 0.0
      %480 = vmatpush.msra.mxu0 0.0
      %481 = vmatpush.msra.mxu0 %v460
      %482 = vmatmul.f32.gmra.mxu0 %v458
      %v483 = vpop.f32.mrf.mxu0
      %v484 = vadd.f32 0.0, %v483
      %485 = vdwg.mxu0
      %486 = vmatpush.msra.mxu0 0.0
      %487 = vmatpush.msra.mxu0 0.0
      %488 = vmatpush.msra.mxu0 0.0
      %489 = vmatpush.msra.mxu0 0.0
      %490 = vmatpush.msra.mxu0 0.0
      %491 = vmatpush.msra.mxu0 0.0
      %492 = vmatpush.msra.mxu0 0.0
      %493 = vmatpush.msra.mxu0 0.0
      %494 = vmatpush.msra.mxu0 0.0
      %495 = vmatpush.msra.mxu0 0.0
      %496 = vmatpush.msra.mxu0 0.0
      %497 = vmatpush.msra.mxu0 0.0
      %498 = vmatpush.msra.mxu0 0.0
      %499 = vmatpush.msra.mxu0 0.0
      %500 = vmatpush.msra.mxu0 0.0
      %501 = vmatpush.msra.mxu0 %v462
      %502 = vmatmul.f32.gmra.mxu0 %v458
      %v503 = vpop.f32.mrf.mxu0
      %v504 = vadd.f32 0.0, %v503
      %505 = vdwg.mxu0
      %506 = vmatpush.msra.mxu0 0.0
      %507 = vmatpush.msra.mxu0 0.0
      %508 = vmatpush.msra.mxu0 0.0
      %509 = vmatpush.msra.mxu0 0.0
      %510 = vmatpush.msra.mxu0 0.0
      %511 = vmatpush.msra.mxu0 0.0
      %512 = vmatpush.msra.mxu0 0.0
      %513 = vmatpush.msra.mxu0 0.0
      %514 = vmatpush.msra.mxu0 0.0
      %515 = vmatpush.msra.mxu0 0.0
      %516 = vmatpush.msra.mxu0 0.0
      %517 = vmatpush.msra.mxu0 0.0
      %518 = vmatpush.msra.mxu0 0.0
      %519 = vmatpush.msra.mxu0 0.0
      %520 = vmatpush.msra.mxu0 0.0
      %521 = vmatpush.msra.mxu0 %v464
      %522 = vmatmul.f32.gmra.mxu0 %v458
      %v523 = vpop.f32.mrf.mxu0
      %v524 = vadd.f32 0.0, %v523
      %525 = vdwg.mxu0
      %v526 = vadd.f32 %v433, %v484
      %v527 = vadd.f32 %v434, %v504
      %v528 = vadd.f32 %v435, %v524
      %s529 = scalar_lea.vmem %s1, 32
      %v530 = vld [vmem:[%s529] sm:$0xff]
      %531 = vst [vmem:[#allocation1] ss:$2 sm:$0xff] %v171
      %s532 = scalar_lea.vmem [#allocation1], 16
      %533 = vst [vmem:[%s532] ss:$2 sm:$0xff] %v172
      %v534 = vld.sshfl [vmem:[#allocation1] sm:$0xff pattern:$0x75316420]
      %v535 = vld.sshfl [vmem:[#allocation1 + $0x8] sm:$0xff pattern:$0x75316420]
      %v536 = vld.sshfl [vmem:[#allocation1 + $0x10] sm:$0xff pattern:$0x75316420]
      %v537 = vld.sshfl [vmem:[#allocation1 + $0x18] sm:$0xff pattern:$0x75316420]
      %538 = vrot.lane.b32.xlu0 %v534, 109
      %v539 = vpop.permute.xlu0 %538
      %540 = vrot.lane.b32.xlu0 %v535, 109
      %v541 = vpop.permute.xlu0 %540
      %542 = vrot.lane.b32.xlu0 %v536, 109
      %v543 = vpop.permute.xlu0 %542
      %544 = vrot.lane.b32.xlu0 %v537, 109
      %v545 = vpop.permute.xlu0 %544
      %vm546 = vcmask 891904
      %v547 = vsel %vm546, %v539, %v541
      %v548 = vsel %vm546, %v541, %v543
      %v549 = vsel %vm546, %v543, %v545
      %v551 = vsel %vm197, %v530, 0
      %v553 = vsel %vm201, %v547, 0
      %v555 = vsel %vm201, %v548, 0
      %v557 = vsel %vm201, %v549, 0
      %559 = vmatpush.msra.mxu0 0.0
      %560 = vmatpush.msra.mxu0 0.0
      %561 = vmatpush.msra.mxu0 0.0
      %562 = vmatpush.msra.mxu0 0.0
      %563 = vmatpush.msra.mxu0 0.0
      %564 = vmatpush.msra.mxu0 0.0
      %565 = vmatpush.msra.mxu0 0.0
      %566 = vmatpush.msra.mxu0 0.0
      %567 = vmatpush.msra.mxu0 0.0
      %568 = vmatpush.msra.mxu0 0.0
      %569 = vmatpush.msra.mxu0 0.0
      %570 = vmatpush.msra.mxu0 0.0
      %571 = vmatpush.msra.mxu0 0.0
      %572 = vmatpush.msra.mxu0 0.0
      %573 = vmatpush.msra.mxu0 0.0
      %574 = vmatpush.msra.mxu0 %v553
      %575 = vmatmul.f32.gmra.mxu0 %v551
      %v576 = vpop.f32.mrf.mxu0
      %v577 = vadd.f32 0.0, %v576
      %578 = vdwg.mxu0
      %579 = vmatpush.msra.mxu0 0.0
      %580 = vmatpush.msra.mxu0 0.0
      %581 = vmatpush.msra.mxu0 0.0
      %582 = vmatpush.msra.mxu0 0.0
      %583 = vmatpush.msra.mxu0 0.0
      %584 = vmatpush.msra.mxu0 0.0
      %585 = vmatpush.msra.mxu0 0.0
      %586 = vmatpush.msra.mxu0 0.0
      %587 = vmatpush.msra.mxu0 0.0
      %588 = vmatpush.msra.mxu0 0.0
      %589 = vmatpush.msra.mxu0 0.0
      %590 = vmatpush.msra.mxu0 0.0
      %591 = vmatpush.msra.mxu0 0.0
      %592 = vmatpush.msra.mxu0 0.0
      %593 = vmatpush.msra.mxu0 0.0
      %594 = vmatpush.msra.mxu0 %v555
      %595 = vmatmul.f32.gmra.mxu0 %v551
      %v596 = vpop.f32.mrf.mxu0
      %v597 = vadd.f32 0.0, %v596
      %598 = vdwg.mxu0
      %599 = vmatpush.msra.mxu0 0.0
      %600 = vmatpush.msra.mxu0 0.0
      %601 = vmatpush.msra.mxu0 0.0
      %602 = vmatpush.msra.mxu0 0.0
      %603 = vmatpush.msra.mxu0 0.0
      %604 = vmatpush.msra.mxu0 0.0
      %605 = vmatpush.msra.mxu0 0.0
      %606 = vmatpush.msra.mxu0 0.0
      %607 = vmatpush.msra.mxu0 0.0
      %608 = vmatpush.msra.mxu0 0.0
      %609 = vmatpush.msra.mxu0 0.0
      %610 = vmatpush.msra.mxu0 0.0
      %611 = vmatpush.msra.mxu0 0.0
      %612 = vmatpush.msra.mxu0 0.0
      %613 = vmatpush.msra.mxu0 0.0
      %614 = vmatpush.msra.mxu0 %v557
      %615 = vmatmul.f32.gmra.mxu0 %v551
      %v616 = vpop.f32.mrf.mxu0
      %v617 = vadd.f32 0.0, %v616
      %618 = vdwg.mxu0
      %v619 = vadd.f32 %v526, %v577
      %v620 = vadd.f32 %v527, %v597
      %v621 = vadd.f32 %v528, %v617
      %s622 = scalar_lea.vmem %s1, 40
      %v623 = vld [vmem:[%s622] sm:$0xff]
      %624 = vst [vmem:[#allocation1] ss:$2 sm:$0xff] %v171
      %s625 = scalar_lea.vmem [#allocation1], 16
      %626 = vst [vmem:[%s625] ss:$2 sm:$0xff] %v172
      %v627 = vld.sshfl [vmem:[#allocation1] sm:$0xff pattern:$0x75316420]
      %v628 = vld.sshfl [vmem:[#allocation1 + $0x8] sm:$0xff pattern:$0x75316420]
      %v629 = vld.sshfl [vmem:[#allocation1 + $0x10] sm:$0xff pattern:$0x75316420]
      %v630 = vld.sshfl [vmem:[#allocation1 + $0x18] sm:$0xff pattern:$0x75316420]
      %631 = vrot.lane.b32.xlu0 %v627, 108
      %v632 = vpop.permute.xlu0 %631
      %633 = vrot.lane.b32.xlu0 %v628, 108
      %v634 = vpop.permute.xlu0 %633
      %635 = vrot.lane.b32.xlu0 %v629, 108
      %v636 = vpop.permute.xlu0 %635
      %637 = vrot.lane.b32.xlu0 %v630, 108
      %v638 = vpop.permute.xlu0 %637
      %vm639 = vcmask 883712
      %v640 = vsel %vm639, %v632, %v634
      %v641 = vsel %vm639, %v634, %v636
      %v642 = vsel %vm639, %v636, %v638
      %v644 = vsel %vm197, %v623, 0
      %v646 = vsel %vm201, %v640, 0
      %v648 = vsel %vm201, %v641, 0
      %v650 = vsel %vm201, %v642, 0
      %652 = vmatpush.msra.mxu0 0.0
      %653 = vmatpush.msra.mxu0 0.0
      %654 = vmatpush.msra.mxu0 0.0
      %655 = vmatpush.msra.mxu0 0.0
      %656 = vmatpush.msra.mxu0 0.0
      %657 = vmatpush.msra.mxu0 0.0
      %658 = vmatpush.msra.mxu0 0.0
      %659 = vmatpush.msra.mxu0 0.0
      %660 = vmatpush.msra.mxu0 0.0
      %661 = vmatpush.msra.mxu0 0.0
      %662 = vmatpush.msra.mxu0 0.0
      %663 = vmatpush.msra.mxu0 0.0
      %664 = vmatpush.msra.mxu0 0.0
      %665 = vmatpush.msra.mxu0 0.0
      %666 = vmatpush.msra.mxu0 0.0
      %667 = vmatpush.msra.mxu0 %v646
      %668 = vmatmul.f32.gmra.mxu0 %v644
      %v669 = vpop.f32.mrf.mxu0
      %v670 = vadd.f32 0.0, %v669
      %671 = vdwg.mxu0
      %672 = vmatpush.msra.mxu0 0.0
      %673 = vmatpush.msra.mxu0 0.0
      %674 = vmatpush.msra.mxu0 0.0
      %675 = vmatpush.msra.mxu0 0.0
      %676 = vmatpush.msra.mxu0 0.0
      %677 = vmatpush.msra.mxu0 0.0
      %678 = vmatpush.msra.mxu0 0.0
      %679 = vmatpush.msra.mxu0 0.0
      %680 = vmatpush.msra.mxu0 0.0
      %681 = vmatpush.msra.mxu0 0.0
      %682 = vmatpush.msra.mxu0 0.0
      %683 = vmatpush.msra.mxu0 0.0
      %684 = vmatpush.msra.mxu0 0.0
      %685 = vmatpush.msra.mxu0 0.0
      %686 = vmatpush.msra.mxu0 0.0
      %687 = vmatpush.msra.mxu0 %v648
      %688 = vmatmul.f32.gmra.mxu0 %v644
      %v689 = vpop.f32.mrf.mxu0
      %v690 = vadd.f32 0.0, %v689
      %691 = vdwg.mxu0
      %692 = vmatpush.msra.mxu0 0.0
      %693 = vmatpush.msra.mxu0 0.0
      %694 = vmatpush.msra.mxu0 0.0
      %695 = vmatpush.msra.mxu0 0.0
      %696 = vmatpush.msra.mxu0 0.0
      %697 = vmatpush.msra.mxu0 0.0
      %698 = vmatpush.msra.mxu0 0.0
      %699 = vmatpush.msra.mxu0 0.0
      %700 = vmatpush.msra.mxu0 0.0
      %701 = vmatpush.msra.mxu0 0.0
      %702 = vmatpush.msra.mxu0 0.0
      %703 = vmatpush.msra.mxu0 0.0
      %704 = vmatpush.msra.mxu0 0.0
      %705 = vmatpush.msra.mxu0 0.0
      %706 = vmatpush.msra.mxu0 0.0
      %707 = vmatpush.msra.mxu0 %v650
      %708 = vmatmul.f32.gmra.mxu0 %v644
      %v709 = vpop.f32.mrf.mxu0
      %v710 = vadd.f32 0.0, %v709
      %711 = vdwg.mxu0
      %v712 = vadd.f32 %v619, %v670
      %v713 = vadd.f32 %v620, %v690
      %v714 = vadd.f32 %v621, %v710
      %s715 = scalar_lea.vmem %s1, 48
      %v716 = vld [vmem:[%s715] sm:$0xff]
      %717 = vst [vmem:[#allocation1] ss:$2 sm:$0xff] %v171
      %s718 = scalar_lea.vmem [#allocation1], 16
      %719 = vst [vmem:[%s718] ss:$2 sm:$0xff] %v172
      %v720 = vld.sshfl [vmem:[#allocation1] sm:$0xff pattern:$0x75316420]
      %v721 = vld.sshfl [vmem:[#allocation1 + $0x8] sm:$0xff pattern:$0x75316420]
      %v722 = vld.sshfl [vmem:[#allocation1 + $0x10] sm:$0xff pattern:$0x75316420]
      %v723 = vld.sshfl [vmem:[#allocation1 + $0x18] sm:$0xff pattern:$0x75316420]
      %724 = vrot.lane.b32.xlu0 %v720, 92
      %v725 = vpop.permute.xlu0 %724
      %726 = vrot.lane.b32.xlu0 %v721, 92
      %v727 = vpop.permute.xlu0 %726
      %728 = vrot.lane.b32.xlu0 %v722, 92
      %v729 = vpop.permute.xlu0 %728
      %730 = vrot.lane.b32.xlu0 %v723, 92
      %v731 = vpop.permute.xlu0 %730
      %vm732 = vcmask 752640
      %v733 = vsel %vm732, %v725, %v727
      %v734 = vsel %vm732, %v727, %v729
      %v735 = vsel %vm732, %v729, %v731
      %v737 = vsel %vm197, %v716, 0
      %v739 = vsel %vm201, %v733, 0
      %v741 = vsel %vm201, %v734, 0
      %v743 = vsel %vm201, %v735, 0
      %745 = vmatpush.msra.mxu0 0.0
      %746 = vmatpush.msra.mxu0 0.0
      %747 = vmatpush.msra.mxu0 0.0
      %748 = vmatpush.msra.mxu0 0.0
      %749 = vmatpush.msra.mxu0 0.0
      %750 = vmatpush.msra.mxu0 0.0
      %751 = vmatpush.msra.mxu0 0.0
      %752 = vmatpush.msra.mxu0 0.0
      %753 = vmatpush.msra.mxu0 0.0
      %754 = vmatpush.msra.mxu0 0.0
      %755 = vmatpush.msra.mxu0 0.0
      %756 = vmatpush.msra.mxu0 0.0
      %757 = vmatpush.msra.mxu0 0.0
      %758 = vmatpush.msra.mxu0 0.0
      %759 = vmatpush.msra.mxu0 0.0
      %760 = vmatpush.msra.mxu0 %v739
      %761 = vmatmul.f32.gmra.mxu0 %v737
      %v762 = vpop.f32.mrf.mxu0
      %v763 = vadd.f32 0.0, %v762
      %764 = vdwg.mxu0
      %765 = vmatpush.msra.mxu0 0.0
      %766 = vmatpush.msra.mxu0 0.0
      %767 = vmatpush.msra.mxu0 0.0
      %768 = vmatpush.msra.mxu0 0.0
      %769 = vmatpush.msra.mxu0 0.0
      %770 = vmatpush.msra.mxu0 0.0
      %771 = vmatpush.msra.mxu0 0.0
      %772 = vmatpush.msra.mxu0 0.0
      %773 = vmatpush.msra.mxu0 0.0
      %774 = vmatpush.msra.mxu0 0.0
      %775 = vmatpush.msra.mxu0 0.0
      %776 = vmatpush.msra.mxu0 0.0
      %777 = vmatpush.msra.mxu0 0.0
      %778 = vmatpush.msra.mxu0 0.0
      %779 = vmatpush.msra.mxu0 0.0
      %780 = vmatpush.msra.mxu0 %v741
      %781 = vmatmul.f32.gmra.mxu0 %v737
      %v782 = vpop.f32.mrf.mxu0
      %v783 = vadd.f32 0.0, %v782
      %784 = vdwg.mxu0
      %785 = vmatpush.msra.mxu0 0.0
      %786 = vmatpush.msra.mxu0 0.0
      %787 = vmatpush.msra.mxu0 0.0
      %788 = vmatpush.msra.mxu0 0.0
      %789 = vmatpush.msra.mxu0 0.0
      %790 = vmatpush.msra.mxu0 0.0
      %791 = vmatpush.msra.mxu0 0.0
      %792 = vmatpush.msra.mxu0 0.0
      %793 = vmatpush.msra.mxu0 0.0
      %794 = vmatpush.msra.mxu0 0.0
      %795 = vmatpush.msra.mxu0 0.0
      %796 = vmatpush.msra.mxu0 0.0
      %797 = vmatpush.msra.mxu0 0.0
      %798 = vmatpush.msra.mxu0 0.0
      %799 = vmatpush.msra.mxu0 0.0
      %800 = vmatpush.msra.mxu0 %v743
      %801 = vmatmul.f32.gmra.mxu0 %v737
      %v802 = vpop.f32.mrf.mxu0
      %v803 = vadd.f32 0.0, %v802
      %804 = vdwg.mxu0
      %v805 = vadd.f32 %v712, %v763
      %v806 = vadd.f32 %v713, %v783
      %v807 = vadd.f32 %v714, %v803
      %s808 = scalar_lea.vmem %s1, 56
      %v809 = vld [vmem:[%s808] sm:$0xff]
      %810 = vst [vmem:[#allocation1] ss:$2 sm:$0xff] %v171
      %s811 = scalar_lea.vmem [#allocation1], 16
      %812 = vst [vmem:[%s811] ss:$2 sm:$0xff] %v172
      %v813 = vld.sshfl [vmem:[#allocation1] sm:$0xff pattern:$0x75316420]
      %v814 = vld.sshfl [vmem:[#allocation1 + $0x8] sm:$0xff pattern:$0x75316420]
      %v815 = vld.sshfl [vmem:[#allocation1 + $0x10] sm:$0xff pattern:$0x75316420]
      %v816 = vld.sshfl [vmem:[#allocation1 + $0x18] sm:$0xff pattern:$0x75316420]
      %817 = vrot.lane.b32.xlu0 %v813, 91
      %v818 = vpop.permute.xlu0 %817
      %819 = vrot.lane.b32.xlu0 %v814, 91
      %v820 = vpop.permute.xlu0 %819
      %821 = vrot.lane.b32.xlu0 %v815, 91
      %v822 = vpop.permute.xlu0 %821
      %823 = vrot.lane.b32.xlu0 %v816, 91
      %v824 = vpop.permute.xlu0 %823
      %vm825 = vcmask 744448
      %v826 = vsel %vm825, %v818, %v820
      %v827 = vsel %vm825, %v820, %v822
      %v828 = vsel %vm825, %v822, %v824
      %v830 = vsel %vm197, %v809, 0
      %v832 = vsel %vm201, %v826, 0
      %v834 = vsel %vm201, %v827, 0
      %v836 = vsel %vm201, %v828, 0
      %838 = vmatpush.msra.mxu0 0.0
      %839 = vmatpush.msra.mxu0 0.0
      %840 = vmatpush.msra.mxu0 0.0
      %841 = vmatpush.msra.mxu0 0.0
      %842 = vmatpush.msra.mxu0 0.0
      %843 = vmatpush.msra.mxu0 0.0
      %844 = vmatpush.msra.mxu0 0.0
      %845 = vmatpush.msra.mxu0 0.0
      %846 = vmatpush.msra.mxu0 0.0
      %847 = vmatpush.msra.mxu0 0.0
      %848 = vmatpush.msra.mxu0 0.0
      %849 = vmatpush.msra.mxu0 0.0
      %850 = vmatpush.msra.mxu0 0.0
      %851 = vmatpush.msra.mxu0 0.0
      %852 = vmatpush.msra.mxu0 0.0
      %853 = vmatpush.msra.mxu0 %v832
      %854 = vmatmul.f32.gmra.mxu0 %v830
      %v855 = vpop.f32.mrf.mxu0
      %v856 = vadd.f32 0.0, %v855
      %857 = vdwg.mxu0
      %858 = vmatpush.msra.mxu0 0.0
      %859 = vmatpush.msra.mxu0 0.0
      %860 = vmatpush.msra.mxu0 0.0
      %861 = vmatpush.msra.mxu0 0.0
      %862 = vmatpush.msra.mxu0 0.0
      %863 = vmatpush.msra.mxu0 0.0
      %864 = vmatpush.msra.mxu0 0.0
      %865 = vmatpush.msra.mxu0 0.0
      %866 = vmatpush.msra.mxu0 0.0
      %867 = vmatpush.msra.mxu0 0.0
      %868 = vmatpush.msra.mxu0 0.0
      %869 = vmatpush.msra.mxu0 0.0
      %870 = vmatpush.msra.mxu0 0.0
      %871 = vmatpush.msra.mxu0 0.0
      %872 = vmatpush.msra.mxu0 0.0
      %873 = vmatpush.msra.mxu0 %v834
      %874 = vmatmul.f32.gmra.mxu0 %v830
      %v875 = vpop.f32.mrf.mxu0
      %v876 = vadd.f32 0.0, %v875
      %877 = vdwg.mxu0
      %878 = vmatpush.msra.mxu0 0.0
      %879 = vmatpush.msra.mxu0 0.0
      %880 = vmatpush.msra.mxu0 0.0
      %881 = vmatpush.msra.mxu0 0.0
      %882 = vmatpush.msra.mxu0 0.0
      %883 = vmatpush.msra.mxu0 0.0
      %884 = vmatpush.msra.mxu0 0.0
      %885 = vmatpush.msra.mxu0 0.0
      %886 = vmatpush.msra.mxu0 0.0
      %887 = vmatpush.msra.mxu0 0.0
      %888 = vmatpush.msra.mxu0 0.0
      %889 = vmatpush.msra.mxu0 0.0
      %890 = vmatpush.msra.mxu0 0.0
      %891 = vmatpush.msra.mxu0 0.0
      %892 = vmatpush.msra.mxu0 0.0
      %893 = vmatpush.msra.mxu0 %v836
      %894 = vmatmul.f32.gmra.mxu0 %v830
      %v895 = vpop.f32.mrf.mxu0
      %v896 = vadd.f32 0.0, %v895
      %897 = vdwg.mxu0
      %v898 = vadd.f32 %v805, %v856
      %v899 = vadd.f32 %v806, %v876
      %v900 = vadd.f32 %v807, %v896
      %s901 = scalar_lea.vmem %s1, 64
      %v902 = vld [vmem:[%s901] sm:$0xff]
      %903 = vst [vmem:[#allocation1] ss:$2 sm:$0xff] %v171
      %s904 = scalar_lea.vmem [#allocation1], 16
      %905 = vst [vmem:[%s904] ss:$2 sm:$0xff] %v172
      %v906 = vld.sshfl [vmem:[#allocation1] sm:$0xff pattern:$0x75316420]
      %v907 = vld.sshfl [vmem:[#allocation1 + $0x8] sm:$0xff pattern:$0x75316420]
      %v908 = vld.sshfl [vmem:[#allocation1 + $0x10] sm:$0xff pattern:$0x75316420]
      %v909 = vld.sshfl [vmem:[#allocation1 + $0x18] sm:$0xff pattern:$0x75316420]
      %910 = vrot.lane.b32.xlu0 %v906, 90
      %v911 = vpop.permute.xlu0 %910
      %912 = vrot.lane.b32.xlu0 %v907, 90
      %v913 = vpop.permute.xlu0 %912
      %914 = vrot.lane.b32.xlu0 %v908, 90
      %v915 = vpop.permute.xlu0 %914
      %916 = vrot.lane.b32.xlu0 %v909, 90
      %v917 = vpop.permute.xlu0 %916
      %vm918 = vcmask 736256
      %v919 = vsel %vm918, %v911, %v913
      %v920 = vsel %vm918, %v913, %v915
      %v921 = vsel %vm918, %v915, %v917
      %v923 = vsel %vm197, %v902, 0
      %v925 = vsel %vm201, %v919, 0
      %v927 = vsel %vm201, %v920, 0
      %v929 = vsel %vm201, %v921, 0
      %931 = vmatpush.msra.mxu0 0.0
      %932 = vmatpush.msra.mxu0 0.0
      %933 = vmatpush.msra.mxu0 0.0
      %934 = vmatpush.msra.mxu0 0.0
      %935 = vmatpush.msra.mxu0 0.0
      %936 = vmatpush.msra.mxu0 0.0
      %937 = vmatpush.msra.mxu0 0.0
      %938 = vmatpush.msra.mxu0 0.0
      %939 = vmatpush.msra.mxu0 0.0
      %940 = vmatpush.msra.mxu0 0.0
      %941 = vmatpush.msra.mxu0 0.0
      %942 = vmatpush.msra.mxu0 0.0
      %943 = vmatpush.msra.mxu0 0.0
      %944 = vmatpush.msra.mxu0 0.0
      %945 = vmatpush.msra.mxu0 0.0
      %946 = vmatpush.msra.mxu0 %v925
      %947 = vmatmul.f32.gmra.mxu0 %v923
      %v948 = vpop.f32.mrf.mxu0
      %v949 = vadd.f32 0.0, %v948
      %950 = vdwg.mxu0
      %951 = vmatpush.msra.mxu0 0.0
      %952 = vmatpush.msra.mxu0 0.0
      %953 = vmatpush.msra.mxu0 0.0
      %954 = vmatpush.msra.mxu0 0.0
      %955 = vmatpush.msra.mxu0 0.0
      %956 = vmatpush.msra.mxu0 0.0
      %957 = vmatpush.msra.mxu0 0.0
      %958 = vmatpush.msra.mxu0 0.0
      %959 = vmatpush.msra.mxu0 0.0
      %960 = vmatpush.msra.mxu0 0.0
      %961 = vmatpush.msra.mxu0 0.0
      %962 = vmatpush.msra.mxu0 0.0
      %963 = vmatpush.msra.mxu0 0.0
      %964 = vmatpush.msra.mxu0 0.0
      %965 = vmatpush.msra.mxu0 0.0
      %966 = vmatpush.msra.mxu0 %v927
      %967 = vmatmul.f32.gmra.mxu0 %v923
      %v968 = vpop.f32.mrf.mxu0
      %v969 = vadd.f32 0.0, %v968
      %970 = vdwg.mxu0
      %971 = vmatpush.msra.mxu0 0.0
      %972 = vmatpush.msra.mxu0 0.0
      %973 = vmatpush.msra.mxu0 0.0
      %974 = vmatpush.msra.mxu0 0.0
      %975 = vmatpush.msra.mxu0 0.0
      %976 = vmatpush.msra.mxu0 0.0
      %977 = vmatpush.msra.mxu0 0.0
      %978 = vmatpush.msra.mxu0 0.0
      %979 = vmatpush.msra.mxu0 0.0
      %980 = vmatpush.msra.mxu0 0.0
      %981 = vmatpush.msra.mxu0 0.0
      %982 = vmatpush.msra.mxu0 0.0
      %983 = vmatpush.msra.mxu0 0.0
      %984 = vmatpush.msra.mxu0 0.0
      %985 = vmatpush.msra.mxu0 0.0
      %986 = vmatpush.msra.mxu0 %v929
      %987 = vmatmul.f32.gmra.mxu0 %v923
      %v988 = vpop.f32.mrf.mxu0
      %v989 = vadd.f32 0.0, %v988
      %990 = vdwg.mxu0
      %v991 = vadd.f32 %v898, %v949
      %v992 = vadd.f32 %v899, %v969
      %v993 = vadd.f32 %v900, %v989
      %v994 = vld [vmem:[%s2] sm:$0xff]
      %996 = vset.pattern.permute.xlu0 0
      %997 = vperm.xlu0 %996, %v994
      %v998 = vpop.permute.xlu0 %997
      %v1000 = vadd.f32 %v991, %v998
      %v1001 = vadd.f32 %v992, %v998
      %v1002 = vadd.f32 %v993, %v998
      %1003 = vst [vmem:[%s170] sm:$0xff] %v1000
      %1004 = vst [vmem:[%s170 + $0x8] sm:$0xff] %v1001
      %1005 = vst [vmem:[%s170 + $0x10] sm:$0xff] %v1002
      %p1006 = scmp.lt.s32.totalorder %s14, 1
      %s1007 = scalar_select %p1006, %s14, 1
      %s1008 = smul.addr %s1007, 3
      %s1009 = smul.addr %s1008, 8
      %s1010 = scalar_lea.vmem %s3, %s1009
      // Predicated region
      $region33: #{flipped_quanv3x3_forward.1} parent=31 // pred_check
        %p1011 = pneg %p100
      $region34: #{flipped_quanv3x3_forward.1} parent=31 // pred_check_branch
        %1013 = sbr.rel (%p1011) target = $region36
      $region35: #{flipped_quanv3x3_forward.1} parent=31 // pred_region
        _
      $region36: #{flipped_quanv3x3_forward.1} parent=31 // pred_fallthru
        _
    $region32: #{flipped_quanv3x3_forward.1} parent=5 // pred_fallthru
      _
    %p1014 = scmp.le.s32.totalorder 2, %s9
    // Predicated region
    $region37: #{flipped_quanv3x3_forward.1} parent=5 // pred_check
      %p1015 = pneg %p1014
    $region38: #{flipped_quanv3x3_forward.1} parent=5 // pred_check_branch
      %1017 = sbr.rel (%p1015) target = $region40
    $region39: #{flipped_quanv3x3_forward.1} parent=5 // pred_region
      %s1018 = ssub.s32 %s9, 2
      // Predicated region
      $region41: #{flipped_quanv3x3_forward.1} parent=39 // pred_check
        %p1019 = pneg %p106
      $region42: #{flipped_quanv3x3_forward.1} parent=39 // pred_check_branch
        %1021 = sbr.rel (%p1019) target = $region44
      $region43: #{flipped_quanv3x3_forward.1} parent=39 // pred_region
        %p1022 = scmp.lt.s32.totalorder %s15, 1
        %s1023 = scalar_select %p1022, %s15, 1
        %s1024 = smul.addr %s1023, 3
        %s1025 = smul.addr %s1024, 8
        %s1026 = scalar_lea.vmem %s3, %s1025
      $region44: #{flipped_quanv3x3_forward.1} parent=39 // pred_fallthru
        _
    $region40: #{flipped_quanv3x3_forward.1} parent=5 // pred_fallthru
      _
  $region6: #{flipped_quanv3x3_forward.1} parent=0 // loop_footer
    %s13 = sadd.s32 1, %s9
  $region7: #{flipped_quanv3x3_forward.1} parent=0 // loop_footer_branch
    %8 = sbr.rel target = $region3
  $region8: #{flipped_quanv3x3_forward.1} parent=0 // loop_exit
    _

</llo_original>
